<compile_context>
chip_gen: v7x
topology: tpu7x:2x2x1
jax: 0.10.0
libtpu: 0.0.40
codegen_flags: <defaults>
</compile_context>

<pallas_src>
import math
import jax
import jax.numpy as jnp
from jax.experimental import pallas as pl
from jax.experimental.pallas import tpu as pltpu


# ---------------------------------------------------------------------------
# Kernel
# ---------------------------------------------------------------------------
def _tca_kernel(topic_ref, weff_ref, beff_ref, x_ref, o_ref, tv_ref):
    # tv = topic @ W_eff + b_eff, computed once per batch block (first sequence tile) into
    # VMEM scratch and reused across all sequence tiles of that batch block.
    @pl.when(pl.program_id(1) == 0)
    def _():
        tv_ref[...] = (
            jnp.dot(topic_ref[...], weff_ref[...], preferred_element_type=jnp.float32)
            + beff_ref[...]
        )

    # Residual add; the (Bblk, 1, E) -> (Bblk, Sblk, E) broadcast stays element-wise in
    # vregs (no materialized temporary).
    o_ref[...] = (
        x_ref[...].astype(jnp.float32) + tv_ref[...][:, None, :]
    ).astype(o_ref.dtype)


# ---------------------------------------------------------------------------
# VMEM-budgeted tiling
# ---------------------------------------------------------------------------
def _vmem_budget_bytes():
    """VMEM byte budget, derived from the actual chip when queryable.

    v5e/v6e have 128 MiB of VMEM per TensorCore, v7x only 64 MiB; use 3/4 of physical
    (capped at 96 MiB) so streaming tiles scale with the generation without OOMing v7x.
    """
    phys = 64 * 1024 * 1024  # conservative default = v7x per-TC VMEM
    try:
        info = pltpu.get_tpu_info()
        phys = int(getattr(info, "vmem_capacity_bytes", phys)) or phys
    except Exception:
        pass
    return min(phys * 3 // 4, 96 * 1024 * 1024)


def _divisor_blocks(n, unit):
    """[n] followed by all multiple-of-`unit` divisors of n, descending."""
    out = [n]
    d = (n // unit) * unit
    while d >= unit:
        if d != n and n % d == 0:
            out.append(d)
        d -= unit
    return out


def _choose_tiling(B, S, E, itemsize, stream_budget):
    """Pick (Bblk, Sblk): largest tiles fitting the streaming-VMEM budget, then shrink the
    batch block (never below 8 / a valid divisor) so the grid has >= 4 (or >= 2) steps."""

    def tile_bytes(bb, sb):
        # x-in + out tiles (double buffered each) + topic tile (double buffered) + tv scratch.
        return 4 * bb * sb * E * itemsize + bb * E * (2 * itemsize + 4)

    b_cands = _divisor_blocks(B, 8)   # descending; sublane-legal for the (Bblk, E) topic block
    s_cands = _divisor_blocks(S, 8)   # descending; sublane-legal for the (Sblk, E) x block

    bb, sb = b_cands[-1], s_cands[-1]          # smallest legal tile (final fallback)
    done = False
    for s_try in s_cands:                      # prefer keeping the full sequence per tile
        for b_try in b_cands:                  # then the largest batch block that fits
            if tile_bytes(b_try, s_try) <= stream_budget:
                bb, sb = b_try, s_try
                done = True
                break
        if done:
            break

    # Prefer >= 4 grid steps (DMA/compute overlap + v7x megacore) when the batch allows it.
    steps = lambda b: (B // b) * (S // sb)
    if steps(bb) < 4:
        better = [c for c in b_cands if c <= bb and steps(c) >= 4]
        if not better:
            better = [c for c in b_cands if c <= bb and steps(c) >= 2]
        if better:
            bb = better[0]
    return bb, sb


# ---------------------------------------------------------------------------
# Wrapper
# ---------------------------------------------------------------------------
def topic_cross_attention(x_seq, topic_emb, params, nhead):
    B, S, E = x_seq.shape
    assert E % nhead == 0  # head split is irrelevant to the math but mirrors the module
    itemsize = jnp.dtype(x_seq.dtype).itemsize

    # One-time projection fusion (tiny ExE matmul, runs as a normal XLA op outside the
    # kernel): halves resident weight VMEM / weight HBM traffic and removes the serial
    # V -> out_proj dependency inside the kernel.
    w_eff = jnp.dot(params["wv"], params["wo"], preferred_element_type=jnp.float32)
    b_eff = (
        jnp.dot(params["bv"], params["wo"], preferred_element_type=jnp.float32)
        + params["bo"]
    )

    budget = _vmem_budget_bytes()
    resident = E * E * 4 + 8 * 128 * 4            # whole-resident W_eff + (padded) b_eff
    stream_budget = budget - resident - (1 << 20)  # 1 MiB slack for compiler scratch
    bblk, sblk = _choose_tiling(B, S, E, itemsize, stream_budget)
    grid = (B // bblk, S // sblk)

    bytes_accessed = (
        2 * B * S * E * itemsize      # x stream in + out stream
        + B * E * itemsize            # topic
        + E * E * 4 + E * 4           # W_eff, b_eff
    )
    flops = 2 * B * E * E             # one (B,E)@(E,E) matmul total (once per batch row)

    vmem_whole = pl.BlockSpec(memory_space=pltpu.MemorySpace.VMEM)  # grid-invariant, resident

    return pl.pallas_call(
        _tca_kernel,
        out_shape=jax.ShapeDtypeStruct((B, S, E), x_seq.dtype),
        grid=grid,
        in_specs=[
            pl.BlockSpec((bblk, E), lambda b, s: (b, 0)),            # topic block
            vmem_whole,                                              # W_eff
            vmem_whole,                                              # b_eff
            pl.BlockSpec((bblk, sblk, E), lambda b, s: (b, s, 0)),   # x stream
        ],
        out_specs=pl.BlockSpec((bblk, sblk, E), lambda b, s: (b, s, 0)),
        scratch_shapes=[pltpu.VMEM((bblk, E), jnp.float32)],         # per-batch-block tv cache
        compiler_params=pltpu.CompilerParams(
            dimension_semantics=("parallel", "arbitrary"),
            vmem_limit_bytes=int(budget),
        ),
        cost_estimate=pl.CostEstimate(
            flops=flops, transcendentals=0, bytes_accessed=bytes_accessed),
    )(topic_emb, w_eff, b_eff, x_seq)


# ---------------------------------------------------------------------------
# Pure-JAX reference (mirrors torch.nn.MultiheadAttention cross-attn + residual)
# ---------------------------------------------------------------------------
def reference(x_seq, topic_emb, params, nhead):
    B, S, E = x_seq.shape
    D = E // nhead
    topic = topic_emb[:, None, :]                                   # (B, 1, E)
    q = x_seq @ params["wq"] + params["bq"]                         # (B, S, E)
    k = topic @ params["wk"] + params["bk"]                         # (B, 1, E)
    v = topic @ params["wv"] + params["bv"]                         # (B, 1, E)
    qh = q.reshape(B, S, nhead, D).transpose(0, 2, 1, 3)            # (B, H, S, D)
    kh = k.reshape(B, 1, nhead, D).transpose(0, 2, 1, 3)            # (B, H, 1, D)
    vh = v.reshape(B, 1, nhead, D).transpose(0, 2, 1, 3)            # (B, H, 1, D)
    scores = jnp.einsum("bhsd,bhkd->bhsk", qh, kh) / math.sqrt(D)   # (B, H, S, 1)
    p = jax.nn.softmax(scores, axis=-1)
    oh = jnp.einsum("bhsk,bhkd->bhsd", p, vh)                       # (B, H, S, D)
    o = oh.transpose(0, 2, 1, 3).reshape(B, S, E)
    return x_seq + (o @ params["wo"] + params["bo"])


def init_params(key, d_model):
    """Deterministic synthetic init (shapes match nn.MultiheadAttention's projections)."""
    ks = jax.random.split(key, 5)
    bound = 1.0 / math.sqrt(d_model)
    mk = lambda k: jax.random.uniform(k, (d_model, d_model), jnp.float32, -bound, bound)
    return {
        "wq": mk(ks[0]), "wk": mk(ks[1]), "wv": mk(ks[2]), "wo": mk(ks[3]),
        "bq": jnp.zeros((1, d_model), jnp.float32),
        "bk": jnp.zeros((1, d_model), jnp.float32),
        "bv": jnp.zeros((1, d_model), jnp.float32),
        "bo": jax.random.uniform(ks[4], (1, d_model), jnp.float32, -bound, bound),
    }


if __name__ == "__main__":
    B, S, d_model, nhead = 2, 8, 32, 4

    key = jax.random.PRNGKey(0)
    kx, kt, kp = jax.random.split(key, 3)
    x_seq = jax.random.normal(kx, (B, S, d_model), jnp.float32)
    topic_emb = jax.random.normal(kt, (B, d_model), jnp.float32)
    params = init_params(kp, d_model)

    out = topic_cross_attention(x_seq, topic_emb, params, nhead)
    out = jax.block_until_ready(out)

    ref = reference(x_seq, topic_emb, params, nhead)
    assert out.shape == (B, S, d_model)
    assert jnp.allclose(out, ref, atol=1e-5, rtol=1e-5), "mismatch vs pure-JAX reference"

    print("KERNEL_OK")
</pallas_src>

<mosaic_0001>
module attributes {stable_mosaic.version = 11 : i64} {
  func.func @_tca_kernel(%arg0: i32, %arg1: i32, %arg2: memref<2x32xf32, #tpu.memory_space<vmem>>, %arg3: memref<32x32xf32, #tpu.memory_space<vmem>>, %arg4: memref<1x32xf32, #tpu.memory_space<vmem>>, %arg5: memref<2x8x32xf32, #tpu.memory_space<vmem>>, %arg6: memref<2x8x32xf32, #tpu.memory_space<vmem>>, %arg7: memref<2x32xf32, #tpu.memory_space<vmem>>) attributes {dimension_semantics = [#tpu.dimension_semantics<parallel>, #tpu.dimension_semantics<arbitrary>], iteration_bounds = array<i64: 1, 1>, scalar_prefetch = 0 : i64, scratch_operands = 1 : i64, tpu.core_type = #tpu.core_type<tc>, window_params = [{transform_indices = @transform_0, window_bounds = array<i64: 2, 32>}, {pipeline_mode = #tpu.pipeline_mode<synchronous>, transform_indices = @transform_1, window_bounds = array<i64: 32, 32>}, {pipeline_mode = #tpu.pipeline_mode<synchronous>, transform_indices = @transform_2, window_bounds = array<i64: 1, 32>}, {transform_indices = @transform_3, window_bounds = array<i64: 2, 8, 32>}, {transform_indices = @transform_4, window_bounds = array<i64: 2, 8, 32>}]} {
    %c0_i32 = arith.constant 0 : i32
    %0 = arith.cmpi eq, %arg1, %c0_i32 : i32
    %1 = arith.extui %0 : i1 to i32
    %c0_i32_0 = arith.constant 0 : i32
    %2 = arith.cmpi ne, %1, %c0_i32_0 : i32
    scf.if %2 {
      %c0_8 = arith.constant 0 : index
      %c0_9 = arith.constant 0 : index
      %9 = vector.load %arg2[%c0_8, %c0_9] : memref<2x32xf32, #tpu.memory_space<vmem>>, vector<2x32xf32>
      %c0_10 = arith.constant 0 : index
      %c0_11 = arith.constant 0 : index
      %10 = vector.load %arg3[%c0_10, %c0_11] : memref<32x32xf32, #tpu.memory_space<vmem>>, vector<32x32xf32>
      %cst = arith.constant dense<0.000000e+00> : vector<2x32xf32>
      %11 = tpu.matmul %9, %10, %cst {dimension_numbers = #tpu.dot_dimension_numbers<[1], [0], [0], [1], [0, 0, 1, 1], [], []>} : vector<2x32xf32>, vector<32x32xf32>, vector<2x32xf32> -> vector<2x32xf32>
      %c0_12 = arith.constant 0 : index
      %c0_13 = arith.constant 0 : index
      %12 = vector.load %arg4[%c0_12, %c0_13] : memref<1x32xf32, #tpu.memory_space<vmem>>, vector<1x32xf32>
      %13 = vector.broadcast %12 : vector<1x32xf32> to vector<2x32xf32>
      %14 = arith.addf %11, %13 : vector<2x32xf32>
      %c0_14 = arith.constant 0 : index
      %c0_15 = arith.constant 0 : index
      %15 = vector.load %arg7[%c0_14, %c0_15] : memref<2x32xf32, #tpu.memory_space<vmem>>, vector<2x32xf32>
      tpu.vector_store %arg7[%c0_14, %c0_15], %14 {strides = array<i32>} : memref<2x32xf32, #tpu.memory_space<vmem>>, vector<2x32xf32>,
    } else {
    }
    %c0 = arith.constant 0 : index
    %c0_1 = arith.constant 0 : index
    %c0_2 = arith.constant 0 : index
    %3 = vector.load %arg5[%c0, %c0_1, %c0_2] : memref<2x8x32xf32, #tpu.memory_space<vmem>>, vector<2x8x32xf32>
    %c0_3 = arith.constant 0 : index
    %c0_4 = arith.constant 0 : index
    %4 = vector.load %arg7[%c0_3, %c0_4] : memref<2x32xf32, #tpu.memory_space<vmem>>, vector<2x32xf32>
    %5 = vector.shape_cast %4 : vector<2x32xf32> to vector<2x1x32xf32>
    %6 = vector.broadcast %5 : vector<2x1x32xf32> to vector<2x8x32xf32>
    %7 = arith.addf %3, %6 : vector<2x8x32xf32>
    %c0_5 = arith.constant 0 : index
    %c0_6 = arith.constant 0 : index
    %c0_7 = arith.constant 0 : index
    %8 = vector.load %arg6[%c0_5, %c0_6, %c0_7] : memref<2x8x32xf32, #tpu.memory_space<vmem>>, vector<2x8x32xf32>
    tpu.vector_store %arg6[%c0_5, %c0_6, %c0_7], %7 {strides = array<i32>} : memref<2x8x32xf32, #tpu.memory_space<vmem>>, vector<2x8x32xf32>,
    return
  }
  func.func @transform_0(%arg0: i32, %arg1: i32) -> (i32, i32) {
    %c0_i32 = arith.constant 0 : i32
    %c0_i32_0 = arith.constant 0 : i32
    return %arg0, %c0_i32 : i32, i32
  }
  func.func @transform_1(%arg0: i32, %arg1: i32) -> (i32, i32) {
    %c0_i32 = arith.constant 0 : i32
    %c0_i32_0 = arith.constant 0 : i32
    %c0_i32_1 = arith.constant 0 : i32
    return %c0_i32, %c0_i32_0 : i32, i32
  }
  func.func @transform_2(%arg0: i32, %arg1: i32) -> (i32, i32) {
    %c0_i32 = arith.constant 0 : i32
    %c0_i32_0 = arith.constant 0 : i32
    %c0_i32_1 = arith.constant 0 : i32
    return %c0_i32, %c0_i32_0 : i32, i32
  }
  func.func @transform_3(%arg0: i32, %arg1: i32) -> (i32, i32, i32) {
    %c0_i32 = arith.constant 0 : i32
    %c0_i32_0 = arith.constant 0 : i32
    return %arg0, %arg1, %c0_i32 : i32, i32, i32
  }
  func.func @transform_4(%arg0: i32, %arg1: i32) -> (i32, i32, i32) {
    %c0_i32 = arith.constant 0 : i32
    %c0_i32_0 = arith.constant 0 : i32
    return %arg0, %arg1, %c0_i32 : i32, i32, i32
  }
}

</mosaic_0001>

<llo_original>
// kernel: tpu_custom_call.1
$region0: #{tpu_custom_call.1}
  #allocation0 [shape = 'u32[]', space=smem, size = 0x4, offset = 0x4, fixed_abs, tag = 'smem constant byte address 0x4 - core index']
  #allocation1 [shape = 'u32[144,128]{1,0:T(1,128)}', space=vmem, size = 0x12000, scoped, tag = 'internal scratch']
  #allocation2 [shape = 'f32[2,32]{1,0:T(2,128)}', space=vmem, size = 0x400, scoped, tag = 'scratch operand']
  %s0 = inlined_call_operand.hbm [shape: f32[2,32], index: 0, kind: input, shape index: {}]
  %s1 = inlined_call_operand.hbm [shape: f32[32,32], index: 1, kind: input, shape index: {}]
  %s2 = inlined_call_operand.vmem [shape: f32[1,32], index: 2, kind: input, shape index: {}]
  %s3 = inlined_call_operand.hbm [shape: f32[2,8,32], index: 3, kind: input, shape index: {}]
  %s4 = inlined_call_operand.hbm [shape: f32[2,8,32], index: 4, kind: output, shape index: {}]
  %s5 = sld [smem:[#allocation0]]
  $region42: #{tpu_custom_call.1} parent=0
    _
  %s7 = ssub.s32 1, %s5
  %s8 = scalar_select 0, %s7, %s5
  $region1: #{tpu_custom_call.1} parent=0
    #allocation3 [shape = 'u8[1024]{0}', space=vmem, size = 0x400, scoped, tag = 'input window, operand 0, single buffered']
    #allocation4 [shape = 's32[1]{0}', space=sflag, size = 0x4, scoped, tag = 'scoped memory for tpu_custom_call.1']
    #allocation5 [shape = 's32[1]{0}', space=sflag, size = 0x4, scoped, tag = 'scoped memory for tpu_custom_call.1']
    #allocation6 [shape = 'u8[16384]{0}', space=vmem, size = 0x4000, scoped, tag = 'input window, operand 1, single buffered']
    #allocation7 [shape = 's32[1]{0}', space=sflag, size = 0x4, scoped, tag = 'scoped memory for tpu_custom_call.1']
    #allocation8 [shape = 'u8[8192]{0}', space=vmem, size = 0x2000, scoped, tag = 'input window, operand 3, single buffered']
    #allocation9 [shape = 'u8[8192]{0}', space=vmem, size = 0x2000, scoped, tag = 'output window, operand 0, single buffered']
    %9 = vsyncpa [#allocation4], 0
    %10 = vsyncpa [#allocation7], 0
    %11 = vsyncpa [#allocation5], 0
    // Predicated region
    $region2: #{tpu_custom_call.1} parent=1 // pred_check
      _
    $region3: #{tpu_custom_call.1} parent=1 // pred_check_branch
      %13 = sbr.rel (0) target = $region5
    $region4: #{tpu_custom_call.1} parent=1 // pred_region
      %s15 = ssub.s32 32, 32
      %16 = vsyncadd [#allocation4], %s15
      %s18 = sshll.u32 [#allocation3], 4
      %s19 = int_to_ptr.vmem [resolvable:$true] %s18
      %21 = dma.hbm_to_vmem [thread:$0]  %s0, 32, %s19, [#allocation4]
    $region5: #{tpu_custom_call.1} parent=1 // pred_fallthru
      _
    // Predicated region
    $region6: #{tpu_custom_call.1} parent=1 // pred_check
      _
    $region7: #{tpu_custom_call.1} parent=1 // pred_check_branch
      %23 = sbr.rel (0) target = $region9
    $region8: #{tpu_custom_call.1} parent=1 // pred_region
      %s25 = ssub.s32 512, 512
      %26 = vsyncadd [#allocation7], %s25
      %s27 = sshll.u32 [#allocation6], 4
      %s28 = int_to_ptr.vmem [resolvable:$true] %s27
      %33 = dma.hbm_to_vmem [thread:$0]  %s1, 512, %s28, [#allocation7], 128, 128, 8
    $region9: #{tpu_custom_call.1} parent=1 // pred_fallthru
      _
    // Predicated region
    $region10: #{tpu_custom_call.1} parent=1 // pred_check
      _
    $region11: #{tpu_custom_call.1} parent=1 // pred_check_branch
      %35 = sbr.rel (0) target = $region13
    $region12: #{tpu_custom_call.1} parent=1 // pred_region
      _
    $region13: #{tpu_custom_call.1} parent=1 // pred_fallthru
      _
    // Predicated region
    $region14: #{tpu_custom_call.1} parent=1 // pred_check
      _
    $region15: #{tpu_custom_call.1} parent=1 // pred_check_branch
      %37 = sbr.rel (0) target = $region17
    $region16: #{tpu_custom_call.1} parent=1 // pred_region
      %s39 = ssub.s32 256, 256
      %40 = vsyncadd [#allocation7], %s39
      %s41 = sshll.u32 [#allocation8], 4
      %s42 = int_to_ptr.vmem [resolvable:$true] %s41
      %47 = dma.hbm_to_vmem [thread:$0]  %s3, 256, %s42, [#allocation7], 128, 128, 8
    $region17: #{tpu_custom_call.1} parent=1 // pred_fallthru
      _
    // Predicated region
    $region18: #{tpu_custom_call.1} parent=1 // pred_check
      _
    $region19: #{tpu_custom_call.1} parent=1 // pred_check_branch
      %49 = sbr.rel (0) target = $region21
    $region20: #{tpu_custom_call.1} parent=1 // pred_region
      %50 = dma.done [#allocation4], 32
    $region21: #{tpu_custom_call.1} parent=1 // pred_fallthru
      _
    // Predicated region
    $region22: #{tpu_custom_call.1} parent=1 // pred_check
      _
    $region23: #{tpu_custom_call.1} parent=1 // pred_check_branch
      %52 = sbr.rel (0) target = $region25
    $region24: #{tpu_custom_call.1} parent=1 // pred_region
      %53 = dma.done [#allocation7], 512
    $region25: #{tpu_custom_call.1} parent=1 // pred_fallthru
      _
    // Predicated region
    $region26: #{tpu_custom_call.1} parent=1 // pred_check
      _
    $region27: #{tpu_custom_call.1} parent=1 // pred_check_branch
      %55 = sbr.rel (0) target = $region29
    $region28: #{tpu_custom_call.1} parent=1 // pred_region
      %56 = dma.done [#allocation7], 256
    $region29: #{tpu_custom_call.1} parent=1 // pred_fallthru
      _
    %p57 = scmp.eq.s32.totalorder 0, 0
    // Predicated region
    $region30: #{tpu_custom_call.1} parent=1 // pred_check
      %p58 = pneg %p57
    $region31: #{tpu_custom_call.1} parent=1 // pred_check_branch
      %60 = sbr.rel (%p58) target = $region33
    $region32: #{tpu_custom_call.1} parent=1 // pred_region
      %v61 = vld [vmem:[#allocation3] sm:$0x3]
      %v62 = vld [vmem:[#allocation6] sm:$0xff]
      %v63 = vld [vmem:[#allocation6 + $0x8] sm:$0xff]
      %v64 = vld [vmem:[#allocation6 + $0x10] sm:$0xff]
      %v65 = vld [vmem:[#allocation6 + $0x18] sm:$0xff]
      %v66 = vld [vmem:[%s2] sm:$0x1]
      %v68 = vlaneseq
      %v69 = vshrl.u32 %v68, 7
      %v70 = vsub.s32 0, %v69
      %v71 = vrot.slane %v66, %v70
      %vm73 = vcmask 261120
      %v75 = vsel %vm73, %v61, 0
      %77 = vmatprep.subr.mxu0 0.0
      %78 = vmatpush1.msra.mxu0 %v62
      %79 = vmatprep.subr.mxu0 0.0
      %80 = vmatpush1.msra.mxu0 %v63
      %81 = vmatprep.subr.mxu0 0.0
      %82 = vmatpush1.msra.mxu0 %v64
      %83 = vmatprep.subr.mxu0 0.0
      %84 = vmatpush1.msra.mxu0 %v65
      %85 = vmatprep.subr.mxu0 0.0
      %86 = vmatpush1.msra.mxu0 0.0
      %87 = vmatprep.subr.mxu0 0.0
      %88 = vmatpush1.msra.mxu0 0.0
      %89 = vmatprep.subr.mxu0 0.0
      %90 = vmatpush1.msra.mxu0 0.0
      %91 = vmatprep.subr.mxu0 0.0
      %92 = vmatpush1.msra.mxu0 0.0
      %93 = vmatprep.subr.mxu0 0.0
      %94 = vmatpush1.msra.mxu0 0.0
      %95 = vmatprep.subr.mxu0 0.0
      %96 = vmatpush1.msra.mxu0 0.0
      %97 = vmatprep.subr.mxu0 0.0
      %98 = vmatpush1.msra.mxu0 0.0
      %99 = vmatprep.subr.mxu0 0.0
      %100 = vmatpush1.msra.mxu0 0.0
      %101 = vmatprep.subr.mxu0 0.0
      %102 = vmatpush1.msra.mxu0 0.0
      %103 = vmatprep.subr.mxu0 0.0
      %104 = vmatpush1.msra.mxu0 0.0
      %105 = vmatprep.subr.mxu0 0.0
      %106 = vmatpush1.msra.mxu0 0.0
      %107 = vmatprep.subr.mxu0 0.0
      %108 = vmatpush1.msra.mxu0 0.0
      %109 = vmatprep.subr.mxu0 0.0
      %110 = vmatpush1.msra.mxu0 0.0
      %111 = vmatprep.subr.mxu0 0.0
      %112 = vmatpush1.msra.mxu0 0.0
      %113 = vmatprep.subr.mxu0 0.0
      %114 = vmatpush1.msra.mxu0 0.0
      %115 = vmatprep.subr.mxu0 0.0
      %116 = vmatpush1.msra.mxu0 0.0
      %117 = vmatprep.subr.mxu0 0.0
      %118 = vmatpush1.msra.mxu0 0.0
      %119 = vmatprep.subr.mxu0 0.0
      %120 = vmatpush1.msra.mxu0 0.0
      %121 = vmatprep.subr.mxu0 0.0
      %122 = vmatpush1.msra.mxu0 0.0
      %123 = vmatprep.subr.mxu0 0.0
      %124 = vmatpush1.msra.mxu0 0.0
      %125 = vmatprep.subr.mxu0 0.0
      %126 = vmatpush1.msra.mxu0 0.0
      %127 = vmatprep.subr.mxu0 0.0
      %128 = vmatpush1.msra.mxu0 0.0
      %129 = vmatprep.subr.mxu0 0.0
      %130 = vmatpush1.msra.mxu0 0.0
      %131 = vmatprep.subr.mxu0 0.0
      %132 = vmatpush1.msra.mxu0 0.0
      %133 = vmatprep.subr.mxu0 0.0
      %134 = vmatpush1.msra.mxu0 0.0
      %135 = vmatprep.subr.mxu0 0.0
      %136 = vmatpush1.msra.mxu0 0.0
      %137 = vmatprep.subr.mxu0 0.0
      %138 = vmatpush1.msra.mxu0 0.0
      %139 = vmatprep.subr.mxu0 0.0
      %140 = vmatpush1.msra.mxu0 0.0
      %141 = vmatprep.mubr.f32.mxu0 0.0
      %142 = vmatmul.mubr.f32.gmra.mrb[0].mxu0 %v75
      %v143 = vpop.f32.mrb[0].mxu0
      %v144 = vadd.f32 %v71, %v143
      %v145 = vpop.f32.mrb[0].mxu0
      %146 = vdwg.mxu0
      %vm147 = vcmask 254976
      %148 = vst.msk [vmem:[#allocation2] sm:$0x3] %vm147, %v144
    $region33: #{tpu_custom_call.1} parent=1 // pred_fallthru
      _
    %v149 = vld [vmem:[#allocation8] sm:$0xff]
    %v150 = vld [vmem:[#allocation8 + $0x8] sm:$0xff]
    %v151 = vld [vmem:[#allocation2] sm:$0x3]
    %v154 = vunpack.c.l.s4 1966171168
    %v155 = vunpack.c.0.s8 %v154
    %v156 = vlaneseq
    %v157 = vshrl.u32 %v156, 7
    %v158 = vsub.s32 %v155, %v157
    %v159 = vrot.slane %v151, %v158
    %v160 = vcombine.high %v159, %v159
    %v162 = vunpack.c.l.s4 1966171168
    %v163 = vunpack.c.0.s8 %v162
    %v164 = vlaneseq
    %v165 = vshrl.u32 %v164, 7
    %v166 = vsub.s32 %v163, %v165
    %v167 = vrot.slane %v159, %v166
    %v169 = vunpack.c.l.s4 1966171168
    %v170 = vunpack.c.0.s8 %v169
    %v171 = vlaneseq
    %v172 = vshrl.u32 %v171, 7
    %v173 = vsub.s32 %v170, %v172
    %v174 = vrot.slane %v160, %v173
    %v175 = vlaneseq
    %v176 = vshrl.u32 %v175, 7
    %v177 = vsub.s32 0, %v176
    %v178 = vrot.slane %v167, %v177
    %v179 = vlaneseq
    %v180 = vshrl.u32 %v179, 7
    %v181 = vsub.s32 0, %v180
    %v182 = vrot.slane %v174, %v181
    %v185 = vadd.f32 %v149, %v178
    %v186 = vadd.f32 %v150, %v182
    %vm187 = vcmask 261120
    %188 = vst.msk [vmem:[#allocation9] sm:$0xff] %vm187, %v185
    %189 = vst.msk [vmem:[#allocation9 + $0x8] sm:$0xff] %vm187, %v186
    // Predicated region
    $region34: #{tpu_custom_call.1} parent=1 // pred_check
      _
    $region35: #{tpu_custom_call.1} parent=1 // pred_check_branch
      %191 = sbr.rel (0) target = $region37
    $region36: #{tpu_custom_call.1} parent=1 // pred_region
      %s193 = ssub.s32 256, 256
      %194 = vsyncadd [#allocation5], %s193
      %s195 = sshll.u32 [#allocation9], 4
      %s196 = int_to_ptr.vmem [resolvable:$true] %s195
      %201 = dma.vmem_to_hbm [thread:$0]  %s196, 256, %s4, [#allocation5], 128, 128, 8
    $region37: #{tpu_custom_call.1} parent=1 // pred_fallthru
      _
    // Predicated region
    $region38: #{tpu_custom_call.1} parent=1 // pred_check
      _
    $region39: #{tpu_custom_call.1} parent=1 // pred_check_branch
      %203 = sbr.rel (0) target = $region41
    $region40: #{tpu_custom_call.1} parent=1 // pred_region
      %204 = dma.done [#allocation5], 256
    $region41: #{tpu_custom_call.1} parent=1 // pred_fallthru
      _
    %205 = vsyncpa [#allocation4], 1
    %206 = vsyncpa [#allocation7], 1
    %207 = vsyncpa [#allocation5], 1

</llo_original>
